<compile_context>
chip_gen: v5e
topology: v5e:2x2
jax: 0.10.0
libtpu: 0.0.40
codegen_flags: <defaults>
</compile_context>

<pallas_src>
import jax
import jax.numpy as jnp
from jax import lax
from jax.experimental import pallas as pl
from jax.experimental.pallas import tpu as pltpu


def _make_kernel(tb, total_rows, out_rows, mask_needed):
    """Kernel factory: stream one (tb, C) tile of each input, emit an
    (out_rows, C) f32 partial sum of the per-element KL terms."""

    def kernel(mu1_ref, lv1_ref, mu2_ref, lv2_ref, out_ref):
        # Cast-on-load: inputs stream in their native dtype, math in f32.
        mu1 = mu1_ref[...].astype(jnp.float32)
        lv1 = lv1_ref[...].astype(jnp.float32)
        mu2 = mu2_ref[...].astype(jnp.float32)
        lv2 = lv2_ref[...].astype(jnp.float32)

        diff = mu1 - mu2
        # (lv2 - lv1) + exp(lv1)/exp(lv2) + (mu1-mu2)^2/exp(lv2) - 1, divide-free.
        term = (lv2 - lv1) + jnp.exp(lv1 - lv2) + diff * diff * jnp.exp(-lv2) - 1.0

        if mask_needed:
            # Ragged last block: rows past the array end hold unspecified data;
            # zero their contribution (select kills any inf/nan there).
            i = pl.program_id(0)
            valid = total_rows - i * tb            # >= tb on all but last block
            row_ids = lax.broadcasted_iota(jnp.int32, term.shape, 0)
            term = jnp.where(row_ids < valid, term, 0.0)

        rows, cols = term.shape
        if out_rows == 8:
            # (tb, C) -> (tb//8, 8, C): vreg-aligned chunks; sum over axis 0 is
            # pure elementwise VPU adds (no cross-lane reduce in the hot loop).
            out_ref[...] = jnp.sum(term.reshape(rows // 8, 8, cols), axis=0)
        else:
            # Tiny full-array block (rows < 8): single cheap sublane reduce.
            out_ref[...] = jnp.sum(term, axis=0, keepdims=True)

    return kernel


def gaussian_kl_loss(mu1, logvar1, mu2, logvar2, *, block_rows=4096):
    """Pallas implementation of GaussianKLLoss.forward. Inputs: (B, D)."""
    B, D = mu1.shape
    assert logvar1.shape == (B, D) and mu2.shape == (B, D) and logvar2.shape == (B, D)

    itemsize = jnp.dtype(mu1.dtype).itemsize
    sublane = {4: 8, 2: 16, 1: 32}.get(itemsize, 8)   # packed-sublane multiple

    # --- layout selection (no padding, no HBM copies) ---------------------
    if D % 128 == 0:
        # Lane-dense slab: row-major reshape is layout-compatible (free).
        R, C = (B * D) // 128, 128
        arrays = [a.reshape(R, C) for a in (mu1, logvar1, mu2, logvar2)]
    else:
        # Keep native (B, D): block last dim == full D satisfies (8,128) rule.
        R, C = B, D
        arrays = [mu1, logvar1, mu2, logvar2]

    # --- tile sizing: ~2 MiB per input block, multiple of the sublane pack --
    target_block_bytes = block_rows * 128 * 4            # 2 MiB at default
    target_tb = max(sublane, target_block_bytes // max(1, C * itemsize))

    if R <= sublane:
        tb = R                                            # full-array block
    else:
        tb = min(target_tb, R)
        tb = max(sublane, (tb // sublane) * sublane)      # sublane-aligned

    nb = pl.cdiv(R, tb)
    # v7x megacore: prefer >= 2 grid steps so both TensorCores get work
    # (no-op on single-TC v5e/v6e; negligible overhead either way).
    if nb == 1 and tb >= 2 * sublane:
        tb = ((tb // 2 + sublane - 1) // sublane) * sublane
        nb = pl.cdiv(R, tb)

    mask_needed = (nb * tb != R)
    out_rows = 8 if tb % 8 == 0 else 1                    # tb%8!=0 only if nb==1

    in_spec = pl.BlockSpec((tb, C), lambda i: (i, 0))
    out_spec = pl.BlockSpec((out_rows, C), lambda i: (i, 0))

    # Right-size VMEM: 4 inputs x 2 pipeline buffers + output + compiler headroom.
    block_bytes = tb * C * itemsize
    vmem_limit = 4 * 2 * block_bytes + 2 * out_rows * C * 4 + (4 << 20)
    vmem_limit = int(min(max(vmem_limit, 16 << 20), 96 << 20))

    partials = pl.pallas_call(
        _make_kernel(tb, R, out_rows, mask_needed),
        out_shape=jax.ShapeDtypeStruct((nb * out_rows, C), jnp.float32),
        grid_spec=pltpu.PrefetchScalarGridSpec(
            num_scalar_prefetch=0,
            grid=(nb,),
            in_specs=[in_spec, in_spec, in_spec, in_spec],
            out_specs=out_spec,
        ),
        compiler_params=pltpu.CompilerParams(
            # Each grid step owns its output slice -> no carried state -> the
            # axis is parallel (both TensorCores stream on v7x).
            dimension_semantics=("parallel",),
            vmem_limit_bytes=vmem_limit,
        ),
    )(*arrays)

    # Final tiny reduction + mean over batch, done once in XLA.
    return 0.5 * jnp.sum(partials) / jnp.float32(B)


def _reference(mu1, logvar1, mu2, logvar2):
    mu1, logvar1, mu2, logvar2 = (a.astype(jnp.float32) for a in (mu1, logvar1, mu2, logvar2))
    numerator = jnp.exp(logvar1) + (mu1 - mu2) ** 2
    fraction = numerator / jnp.exp(logvar2)
    kl = 0.5 * jnp.sum(logvar2 - logvar1 + fraction - 1.0, axis=1)
    return jnp.mean(kl, axis=0)


def _check(B, D, dtype=jnp.float32, tol=1e-5):
    key = jax.random.PRNGKey(0)
    k1, k2, k3, k4 = jax.random.split(key, 4)
    mu1 = jax.random.normal(k1, (B, D), dtype=jnp.float32).astype(dtype)
    lv1 = (0.5 * jax.random.normal(k2, (B, D), dtype=jnp.float32)).astype(dtype)
    mu2 = jax.random.normal(k3, (B, D), dtype=jnp.float32).astype(dtype)
    lv2 = (0.5 * jax.random.normal(k4, (B, D), dtype=jnp.float32)).astype(dtype)

    out = jax.block_until_ready(gaussian_kl_loss(mu1, lv1, mu2, lv2))
    ref = _reference(mu1, lv1, mu2, lv2)
    assert jnp.allclose(out, ref, rtol=tol, atol=tol), (B, D, dtype, out, ref)


if __name__ == "__main__":
    # Small (B, D) layout path (D not a multiple of 128), 2-block grid.
    _check(16, 32)
    # Lane-dense path (D % 128 == 0), no pad / no copy.
    _check(8, 128)
    # Ragged last block -> exercises the in-kernel row mask.
    _check(20, 128)
    print("KERNEL_OK")
</pallas_src>

<mosaic_0001>
module attributes {stable_mosaic.version = 11 : i64} {
  func.func @kernel(%arg0: i32, %arg1: memref<8x32xf32, #tpu.memory_space<vmem>>, %arg2: memref<8x32xf32, #tpu.memory_space<vmem>>, %arg3: memref<8x32xf32, #tpu.memory_space<vmem>>, %arg4: memref<8x32xf32, #tpu.memory_space<vmem>>, %arg5: memref<8x32xf32, #tpu.memory_space<vmem>>) attributes {dimension_semantics = [#tpu.dimension_semantics<parallel>], iteration_bounds = array<i64: 2>, scalar_prefetch = 0 : i64, scratch_operands = 0 : i64, tpu.core_type = #tpu.core_type<tc>, window_params = [{transform_indices = @transform_0, window_bounds = array<i64: 8, 32>}, {transform_indices = @transform_1, window_bounds = array<i64: 8, 32>}, {transform_indices = @transform_2, window_bounds = array<i64: 8, 32>}, {transform_indices = @transform_3, window_bounds = array<i64: 8, 32>}, {transform_indices = @transform_4, window_bounds = array<i64: 8, 32>}]} {
    %c0 = arith.constant 0 : index
    %c0_0 = arith.constant 0 : index
    %0 = vector.load %arg1[%c0, %c0_0] : memref<8x32xf32, #tpu.memory_space<vmem>>, vector<8x32xf32>
    %c0_1 = arith.constant 0 : index
    %c0_2 = arith.constant 0 : index
    %1 = vector.load %arg2[%c0_1, %c0_2] : memref<8x32xf32, #tpu.memory_space<vmem>>, vector<8x32xf32>
    %c0_3 = arith.constant 0 : index
    %c0_4 = arith.constant 0 : index
    %2 = vector.load %arg3[%c0_3, %c0_4] : memref<8x32xf32, #tpu.memory_space<vmem>>, vector<8x32xf32>
    %c0_5 = arith.constant 0 : index
    %c0_6 = arith.constant 0 : index
    %3 = vector.load %arg4[%c0_5, %c0_6] : memref<8x32xf32, #tpu.memory_space<vmem>>, vector<8x32xf32>
    %4 = arith.subf %0, %2 : vector<8x32xf32>
    %5 = arith.subf %3, %1 : vector<8x32xf32>
    %6 = arith.subf %1, %3 : vector<8x32xf32>
    %7 = math.exp %6 : vector<8x32xf32>
    %8 = arith.addf %5, %7 : vector<8x32xf32>
    %9 = arith.mulf %4, %4 : vector<8x32xf32>
    %cst = arith.constant 0.000000e+00 : f32
    %10 = vector.broadcast %cst : f32 to vector<8x32xf32>
    %11 = arith.subf %10, %3 : vector<8x32xf32>
    %12 = math.exp %11 : vector<8x32xf32>
    %13 = arith.mulf %9, %12 : vector<8x32xf32>
    %14 = arith.addf %8, %13 : vector<8x32xf32>
    %cst_7 = arith.constant 1.000000e+00 : f32
    %15 = vector.broadcast %cst_7 : f32 to vector<8x32xf32>
    %16 = arith.subf %14, %15 : vector<8x32xf32>
    %17 = vector.shape_cast %16 : vector<8x32xf32> to vector<1x8x32xf32>
    %cst_8 = arith.constant dense<0.000000e+00> : vector<8x32xf32>
    %18 = vector.multi_reduction <add>, %17, %cst_8 [0] : vector<1x8x32xf32> to vector<8x32xf32>
    %c0_9 = arith.constant 0 : index
    %c0_10 = arith.constant 0 : index
    %19 = vector.load %arg5[%c0_9, %c0_10] : memref<8x32xf32, #tpu.memory_space<vmem>>, vector<8x32xf32>
    tpu.vector_store %arg5[%c0_9, %c0_10], %18 {strides = array<i32>} : memref<8x32xf32, #tpu.memory_space<vmem>>, vector<8x32xf32>,
    return
  }
  func.func @transform_0(%arg0: i32) -> (i32, i32) {
    %c0_i32 = arith.constant 0 : i32
    %c0_i32_0 = arith.constant 0 : i32
    return %arg0, %c0_i32 : i32, i32
  }
  func.func @transform_1(%arg0: i32) -> (i32, i32) {
    %c0_i32 = arith.constant 0 : i32
    %c0_i32_0 = arith.constant 0 : i32
    return %arg0, %c0_i32 : i32, i32
  }
  func.func @transform_2(%arg0: i32) -> (i32, i32) {
    %c0_i32 = arith.constant 0 : i32
    %c0_i32_0 = arith.constant 0 : i32
    return %arg0, %c0_i32 : i32, i32
  }
  func.func @transform_3(%arg0: i32) -> (i32, i32) {
    %c0_i32 = arith.constant 0 : i32
    %c0_i32_0 = arith.constant 0 : i32
    return %arg0, %c0_i32 : i32, i32
  }
  func.func @transform_4(%arg0: i32) -> (i32, i32) {
    %c0_i32 = arith.constant 0 : i32
    %c0_i32_0 = arith.constant 0 : i32
    return %arg0, %c0_i32 : i32, i32
  }
}

</mosaic_0001>

<llo_original>
// kernel: tpu_custom_call.1
$region0: #{tpu_custom_call.1}
  #allocation0 [shape = 'u32[]', space=smem, size = 0x4, offset = 0x4, fixed_abs, tag = 'smem constant byte address 0x4 - core index']
  #allocation1 [shape = 'u32[72,128]{1,0:T(1,128)}', space=vmem, size = 0x9000, scoped, tag = 'internal scratch']
  %s0 = inlined_call_operand.hbm [shape: f32[16,32], index: 0, kind: input, shape index: {}]
  %s1 = inlined_call_operand.hbm [shape: f32[16,32], index: 1, kind: input, shape index: {}]
  %s2 = inlined_call_operand.hbm [shape: f32[16,32], index: 2, kind: input, shape index: {}]
  %s3 = inlined_call_operand.hbm [shape: f32[16,32], index: 3, kind: input, shape index: {}]
  %s4 = inlined_call_operand.hbm [shape: f32[16,32], index: 4, kind: output, shape index: {}]
  %s5 = sld [smem:[#allocation0]]
  $region65: #{tpu_custom_call.1} parent=0
    _
  %s7 = ssub.s32 1, %s5
  %s8 = scalar_select 0, %s7, %s5
  $region1: #{tpu_custom_call.1} parent=0
    #allocation2 [shape = 'u8[8192]{0}', space=vmem, size = 0x2000, scoped, tag = 'input window, operand 0']
    #allocation3 [shape = 's32[2]{0}', space=sflag, size = 0x8, scoped, tag = 'scoped memory for tpu_custom_call.1']
    #allocation4 [shape = 's32[2]{0}', space=sflag, size = 0x8, scoped, tag = 'scoped memory for tpu_custom_call.1']
    #allocation5 [shape = 'u8[8192]{0}', space=vmem, size = 0x2000, scoped, tag = 'input window, operand 1']
    #allocation6 [shape = 's32[2]{0}', space=sflag, size = 0x8, scoped, tag = 'scoped memory for tpu_custom_call.1']
    #allocation7 [shape = 'u8[8192]{0}', space=vmem, size = 0x2000, scoped, tag = 'input window, operand 2']
    #allocation8 [shape = 'u8[8192]{0}', space=vmem, size = 0x2000, scoped, tag = 'input window, operand 3']
    #allocation9 [shape = 's32[2]{0}', space=sflag, size = 0x8, scoped, tag = 'scoped memory for tpu_custom_call.1']
    #allocation10 [shape = 'u8[8192]{0}', space=vmem, size = 0x2000, scoped, tag = 'output window, operand 0']
    %9 = vsyncpa [#allocation3], 0
    %s10 = scalar_lea.sflag [#allocation3], 1
    %11 = vsyncpa %s10, 0
    %12 = vsyncpa [#allocation6], 0
    %s13 = scalar_lea.sflag [#allocation6], 1
    %14 = vsyncpa %s13, 0
    %15 = vsyncpa [#allocation9], 0
    %s16 = scalar_lea.sflag [#allocation9], 1
    %17 = vsyncpa %s16, 0
    %18 = vsyncpa [#allocation4], 0
    %s19 = scalar_lea.sflag [#allocation4], 1
    %20 = vsyncpa %s19, 0
    loop: start=0, step=1, limit=4
    $region2: #{tpu_custom_call.1} parent=1 // loop_pre_header
      _
    $region3: #{tpu_custom_call.1} parent=1 // loop_header
      %s22 = sphi 0, %s26
      %p23 = scmp.ge.s32.totalorder %s22, 4
      %s32 = sphi 0, %s34
      %s35 = sphi 0, %s32
      %s36 = sphi 0, %s35
      %s52 = sphi 0, %s36
      %s58 = sphi 0, %s60
      %s61 = sphi 0, %s58
      %s62 = sphi 0, %s61
      %s78 = sphi 0, %s62
      %s84 = sphi 0, %s86
      %s87 = sphi 0, %s84
      %s88 = sphi 0, %s87
      %s104 = sphi 0, %s88
      %s110 = sphi 0, %s112
      %s113 = sphi 0, %s110
      %s114 = sphi 0, %s113
      %s130 = sphi 0, %s114
      %s136 = sphi 0, %s138
      %s139 = sphi 0, %s136
      %s140 = sphi 0, %s139
      %s156 = sphi 0, %s140
    $region4: #{tpu_custom_call.1} parent=1 // loop_header_branch
      %25 = sbr.rel (%p23) target = $region8
    $region5: #{tpu_custom_call.1} parent=1 // loop_body
      %s27 = ssub.s32 %s22, 1
      %s28 = ssub.s32 %s22, 2
      %s29 = sadd.s32 %s22, 1
      %s30 = ssub.s32 %s22, %s29
      %p31 = scmp.eq.s32.totalorder %s30, 0
      %s33 = sadd.s32 %s32, 1
      %s34 = scalar_select %p31, %s32, %s33
      %p37 = pneg %p31
      %p38 = scmp.eq.s32.totalorder %s22, 1
      %p39 = por %p37, %p38
      %p40 = scmp.ne.s32.totalorder %s32, %s35
      %p41 = scmp.eq.s32.totalorder %s22, 0
      %p42 = por %p40, %p41
      %p43 = scmp.ne.s32.totalorder %s32, %s35
      %p44 = scmp.eq.s32.totalorder %s27, 1
      %p45 = por %p43, %p44
      %p46 = scmp.ne.s32.totalorder %s35, %s36
      %p47 = scmp.eq.s32.totalorder %s27, 0
      %p48 = por %p46, %p47
      %p49 = scmp.ne.s32.totalorder %s35, %s36
      %p50 = scmp.eq.s32.totalorder %s28, 1
      %p51 = por %p49, %p50
      %p53 = scmp.ne.s32.totalorder %s36, %s52
      %p54 = scmp.eq.s32.totalorder %s28, 0
      %p55 = por %p53, %p54
      %s56 = ssub.s32 %s22, %s29
      %p57 = scmp.eq.s32.totalorder %s56, 0
      %s59 = sadd.s32 %s58, 1
      %s60 = scalar_select %p57, %s58, %s59
      %p63 = pneg %p57
      %p64 = scmp.eq.s32.totalorder %s22, 1
      %p65 = por %p63, %p64
      %p66 = scmp.ne.s32.totalorder %s58, %s61
      %p67 = scmp.eq.s32.totalorder %s22, 0
      %p68 = por %p66, %p67
      %p69 = scmp.ne.s32.totalorder %s58, %s61
      %p70 = scmp.eq.s32.totalorder %s27, 1
      %p71 = por %p69, %p70
      %p72 = scmp.ne.s32.totalorder %s61, %s62
      %p73 = scmp.eq.s32.totalorder %s27, 0
      %p74 = por %p72, %p73
      %p75 = scmp.ne.s32.totalorder %s61, %s62
      %p76 = scmp.eq.s32.totalorder %s28, 1
      %p77 = por %p75, %p76
      %p79 = scmp.ne.s32.totalorder %s62, %s78
      %p80 = scmp.eq.s32.totalorder %s28, 0
      %p81 = por %p79, %p80
      %s82 = ssub.s32 %s22, %s29
      %p83 = scmp.eq.s32.totalorder %s82, 0
      %s85 = sadd.s32 %s84, 1
      %s86 = scalar_select %p83, %s84, %s85
      %p89 = pneg %p83
      %p90 = scmp.eq.s32.totalorder %s22, 1
      %p91 = por %p89, %p90
      %p92 = scmp.ne.s32.totalorder %s84, %s87
      %p93 = scmp.eq.s32.totalorder %s22, 0
      %p94 = por %p92, %p93
      %p95 = scmp.ne.s32.totalorder %s84, %s87
      %p96 = scmp.eq.s32.totalorder %s27, 1
      %p97 = por %p95, %p96
      %p98 = scmp.ne.s32.totalorder %s87, %s88
      %p99 = scmp.eq.s32.totalorder %s27, 0
      %p100 = por %p98, %p99
      %p101 = scmp.ne.s32.totalorder %s87, %s88
      %p102 = scmp.eq.s32.totalorder %s28, 1
      %p103 = por %p101, %p102
      %p105 = scmp.ne.s32.totalorder %s88, %s104
      %p106 = scmp.eq.s32.totalorder %s28, 0
      %p107 = por %p105, %p106
      %s108 = ssub.s32 %s22, %s29
      %p109 = scmp.eq.s32.totalorder %s108, 0
      %s111 = sadd.s32 %s110, 1
      %s112 = scalar_select %p109, %s110, %s111
      %p115 = pneg %p109
      %p116 = scmp.eq.s32.totalorder %s22, 1
      %p117 = por %p115, %p116
      %p118 = scmp.ne.s32.totalorder %s110, %s113
      %p119 = scmp.eq.s32.totalorder %s22, 0
      %p120 = por %p118, %p119
      %p121 = scmp.ne.s32.totalorder %s110, %s113
      %p122 = scmp.eq.s32.totalorder %s27, 1
      %p123 = por %p121, %p122
      %p124 = scmp.ne.s32.totalorder %s113, %s114
      %p125 = scmp.eq.s32.totalorder %s27, 0
      %p126 = por %p124, %p125
      %p127 = scmp.ne.s32.totalorder %s113, %s114
      %p128 = scmp.eq.s32.totalorder %s28, 1
      %p129 = por %p127, %p128
      %p131 = scmp.ne.s32.totalorder %s114, %s130
      %p132 = scmp.eq.s32.totalorder %s28, 0
      %p133 = por %p131, %p132
      %s134 = ssub.s32 %s22, %s29
      %p135 = scmp.eq.s32.totalorder %s134, 0
      %s137 = sadd.s32 %s136, 1
      %s138 = scalar_select %p135, %s136, %s137
      %p141 = pneg %p135
      %p142 = scmp.eq.s32.totalorder %s22, 1
      %p143 = por %p141, %p142
      %p144 = scmp.ne.s32.totalorder %s136, %s139
      %p145 = scmp.eq.s32.totalorder %s22, 0
      %p146 = por %p144, %p145
      %p147 = scmp.ne.s32.totalorder %s136, %s139
      %p148 = scmp.eq.s32.totalorder %s27, 1
      %p149 = por %p147, %p148
      %p150 = scmp.ne.s32.totalorder %s139, %s140
      %p151 = scmp.eq.s32.totalorder %s27, 0
      %p152 = por %p150, %p151
      %p153 = scmp.ne.s32.totalorder %s139, %s140
      %p154 = scmp.eq.s32.totalorder %s28, 1
      %p155 = por %p153, %p154
      %p157 = scmp.ne.s32.totalorder %s140, %s156
      %p158 = scmp.eq.s32.totalorder %s28, 0
      %p159 = por %p157, %p158
      %p160 = scmp.le.s32.totalorder 1, %s22
      %p161 = scmp.lt.s32.totalorder %s22, 3
      %p162 = pnand %p160, %p161
      %p163 = pneg %p162
      // Predicated region
      $region9: #{tpu_custom_call.1} parent=5 // pred_check
        _
      $region10: #{tpu_custom_call.1} parent=5 // pred_check_branch
        %165 = sbr.rel (%p162) target = $region12
      $region11: #{tpu_custom_call.1} parent=5 // pred_region
        %s166 = ssub.s32 %s22, 1
      $region12: #{tpu_custom_call.1} parent=5 // pred_fallthru
        _
      %p167 = scmp.lt.s32.totalorder %s22, 2
      // Predicated region
      $region13: #{tpu_custom_call.1} parent=5 // pred_check
        %p168 = pneg %p167
      $region14: #{tpu_custom_call.1} parent=5 // pred_check_branch
        %170 = sbr.rel (%p168) target = $region16
      $region15: #{tpu_custom_call.1} parent=5 // pred_region
        // Predicated region
        $region17: #{tpu_custom_call.1} parent=15 // pred_check
          %p171 = pneg %p42
        $region18: #{tpu_custom_call.1} parent=15 // pred_check_branch
          %173 = sbr.rel (%p171) target = $region20
        $region19: #{tpu_custom_call.1} parent=15 // pred_region
          %s174 = sand.u32 %s32, 1
          %s175 = scalar_lea.sflag [#allocation3], %s174
          %s176 = sand.u32 %s32, 1
          %s177 = smul.addr %s176, 8
          %s178 = scalar_lea.vmem [#allocation2], %s177
          %180 = vsyncadd %s175, 0
          %s181 = smul.addr %s22, 8
          %s182 = scalar_lea.hbm %s0, %s181
          %s184 = sshll.u32 %s182, 4
          %s185 = int_to_ptr.hbm [resolvable:$true] %s184
          %s186 = sshll.u32 %s178, 4
          %s187 = int_to_ptr.vmem [resolvable:$true] %s186
          %189 = dma.hbm_to_vmem [thread:$0]  %s185, 128, %s187, %s175
        $region20: #{tpu_custom_call.1} parent=15 // pred_fallthru
          _
        // Predicated region
        $region21: #{tpu_custom_call.1} parent=15 // pred_check
          %p190 = pneg %p68
        $region22: #{tpu_custom_call.1} parent=15 // pred_check_branch
          %192 = sbr.rel (%p190) target = $region24
        $region23: #{tpu_custom_call.1} parent=15 // pred_region
          %s193 = sand.u32 %s22, 1
          %s194 = scalar_lea.sflag [#allocation6], %s193
          %s195 = sand.u32 %s58, 1
          %s196 = smul.addr %s195, 8
          %s197 = scalar_lea.vmem [#allocation5], %s196
          %199 = vsyncadd %s194, 0
          %s200 = smul.addr %s22, 8
          %s201 = scalar_lea.hbm %s1, %s200
          %s203 = sshll.u32 %s201, 4
          %s204 = int_to_ptr.hbm [resolvable:$true] %s203
          %s205 = sshll.u32 %s197, 4
          %s206 = int_to_ptr.vmem [resolvable:$true] %s205
          %208 = dma.hbm_to_vmem [thread:$0]  %s204, 128, %s206, %s194
        $region24: #{tpu_custom_call.1} parent=15 // pred_fallthru
          _
        // Predicated region
        $region25: #{tpu_custom_call.1} parent=15 // pred_check
          %p209 = pneg %p94
        $region26: #{tpu_custom_call.1} parent=15 // pred_check_branch
          %211 = sbr.rel (%p209) target = $region28
        $region27: #{tpu_custom_call.1} parent=15 // pred_region
          %s212 = sand.u32 %s22, 1
          %s213 = scalar_lea.sflag [#allocation6], %s212
          %s214 = sand.u32 %s84, 1
          %s215 = smul.addr %s214, 8
          %s216 = scalar_lea.vmem [#allocation7], %s215
          %218 = vsyncadd %s213, 0
          %s219 = smul.addr %s22, 8
          %s220 = scalar_lea.hbm %s2, %s219
          %s222 = sshll.u32 %s220, 4
          %s223 = int_to_ptr.hbm [resolvable:$true] %s222
          %s224 = sshll.u32 %s216, 4
          %s225 = int_to_ptr.vmem [resolvable:$true] %s224
          %227 = dma.hbm_to_vmem [thread:$0]  %s223, 128, %s225, %s213
        $region28: #{tpu_custom_call.1} parent=15 // pred_fallthru
          _
        // Predicated region
        $region29: #{tpu_custom_call.1} parent=15 // pred_check
          %p228 = pneg %p120
        $region30: #{tpu_custom_call.1} parent=15 // pred_check_branch
          %230 = sbr.rel (%p228) target = $region32
        $region31: #{tpu_custom_call.1} parent=15 // pred_region
          %s231 = sand.u32 %s110, 1
          %s232 = scalar_lea.sflag [#allocation9], %s231
          %s233 = sand.u32 %s110, 1
          %s234 = smul.addr %s233, 8
          %s235 = scalar_lea.vmem [#allocation8], %s234
          %237 = vsyncadd %s232, 0
          %s238 = smul.addr %s22, 8
          %s239 = scalar_lea.hbm %s3, %s238
          %s241 = sshll.u32 %s239, 4
          %s242 = int_to_ptr.hbm [resolvable:$true] %s241
          %s243 = sshll.u32 %s235, 4
          %s244 = int_to_ptr.vmem [resolvable:$true] %s243
          %246 = dma.hbm_to_vmem [thread:$0]  %s242, 128, %s244, %s232
        $region32: #{tpu_custom_call.1} parent=15 // pred_fallthru
          _
      $region16: #{tpu_custom_call.1} parent=5 // pred_fallthru
        _
      %p247 = scmp.le.s32.totalorder 1, %s22
      %p248 = scmp.lt.s32.totalorder %s22, 3
      %p249 = pnand %p247, %p248
      %p250 = pneg %p249
      // Predicated region
      $region33: #{tpu_custom_call.1} parent=5 // pred_check
        _
      $region34: #{tpu_custom_call.1} parent=5 // pred_check_branch
        %252 = sbr.rel (%p249) target = $region36
      $region35: #{tpu_custom_call.1} parent=5 // pred_region
        %s253 = ssub.s32 %s22, 1
        %s254 = sand.u32 %s35, 1
        %s255 = scalar_lea.sflag [#allocation3], %s254
        %s256 = sand.u32 %s35, 1
        %s257 = smul.addr %s256, 8
        %s258 = scalar_lea.vmem [#allocation2], %s257
        // Predicated region
        $region37: #{tpu_custom_call.1} parent=35 // pred_check
          %p259 = pneg %p48
        $region38: #{tpu_custom_call.1} parent=35 // pred_check_branch
          %261 = sbr.rel (%p259) target = $region40
        $region39: #{tpu_custom_call.1} parent=35 // pred_region
          %263 = dma.done %s255, 128
        $region40: #{tpu_custom_call.1} parent=35 // pred_fallthru
          _
        %s264 = sand.u32 %s27, 1
        %s265 = scalar_lea.sflag [#allocation6], %s264
        %s266 = sand.u32 %s61, 1
        %s267 = smul.addr %s266, 8
        %s268 = scalar_lea.vmem [#allocation5], %s267
        // Predicated region
        $region41: #{tpu_custom_call.1} parent=35 // pred_check
          %p269 = pneg %p74
        $region42: #{tpu_custom_call.1} parent=35 // pred_check_branch
          %271 = sbr.rel (%p269) target = $region44
        $region43: #{tpu_custom_call.1} parent=35 // pred_region
          %273 = dma.done %s265, 128
        $region44: #{tpu_custom_call.1} parent=35 // pred_fallthru
          _
        %s274 = sand.u32 %s27, 1
        %s275 = scalar_lea.sflag [#allocation6], %s274
        %s276 = sand.u32 %s87, 1
        %s277 = smul.addr %s276, 8
        %s278 = scalar_lea.vmem [#allocation7], %s277
        // Predicated region
        $region45: #{tpu_custom_call.1} parent=35 // pred_check
          %p279 = pneg %p100
        $region46: #{tpu_custom_call.1} parent=35 // pred_check_branch
          %281 = sbr.rel (%p279) target = $region48
        $region47: #{tpu_custom_call.1} parent=35 // pred_region
          %283 = dma.done %s275, 128
        $region48: #{tpu_custom_call.1} parent=35 // pred_fallthru
          _
        %s284 = sand.u32 %s113, 1
        %s285 = scalar_lea.sflag [#allocation9], %s284
        %s286 = sand.u32 %s113, 1
        %s287 = smul.addr %s286, 8
        %s288 = scalar_lea.vmem [#allocation8], %s287
        // Predicated region
        $region49: #{tpu_custom_call.1} parent=35 // pred_check
          %p289 = pneg %p126
        $region50: #{tpu_custom_call.1} parent=35 // pred_check_branch
          %291 = sbr.rel (%p289) target = $region52
        $region51: #{tpu_custom_call.1} parent=35 // pred_region
          %293 = dma.done %s285, 128
        $region52: #{tpu_custom_call.1} parent=35 // pred_fallthru
          _
        %s294 = sand.u32 %s35, 1
        %s295 = scalar_lea.sflag [#allocation3], %s294
        %s296 = sand.u32 %s35, 1
        %s297 = smul.addr %s296, 8
        %s298 = scalar_lea.vmem [#allocation2], %s297
        %p299 = pneg %p48
        %p300 = pneg %p45
        %s301 = sand.u32 %s27, 1
        %s302 = scalar_lea.sflag [#allocation6], %s301
        %s303 = sand.u32 %s61, 1
        %s304 = smul.addr %s303, 8
        %s305 = scalar_lea.vmem [#allocation5], %s304
        %p306 = pneg %p74
        %p307 = pneg %p71
        %s308 = sand.u32 %s27, 1
        %s309 = scalar_lea.sflag [#allocation6], %s308
        %s310 = sand.u32 %s87, 1
        %s311 = smul.addr %s310, 8
        %s312 = scalar_lea.vmem [#allocation7], %s311
        %p313 = pneg %p100
        %p314 = pneg %p97
        %s315 = sand.u32 %s113, 1
        %s316 = scalar_lea.sflag [#allocation9], %s315
        %s317 = sand.u32 %s113, 1
        %s318 = smul.addr %s317, 8
        %s319 = scalar_lea.vmem [#allocation8], %s318
        %p320 = pneg %p126
        %p321 = pneg %p123
        %p322 = pneg %p152
        %p323 = pneg %p149
        %s324 = sand.u32 %s139, 1
        %s325 = scalar_lea.sflag [#allocation4], %s324
        %s326 = sand.u32 %s139, 1
        %s327 = smul.addr %s326, 8
        %s328 = scalar_lea.vmem [#allocation10], %s327
        %v329 = vld [vmem:[%s258] sm:$0xff]
        %v330 = vld [vmem:[%s268] sm:$0xff]
        %v331 = vld [vmem:[%s278] sm:$0xff]
        %v332 = vld [vmem:[%s288] sm:$0xff]
        %v333 = vsub.f32 %v329, %v331
        %v334 = vsub.f32 %v332, %v330
        %v335 = vsub.f32 %v330, %v332
        %v336 = vmul.f32 %v335, 1.442695
        %v337 = vpow.pop %v336
        %v338 = vadd.f32 %v334, %v337
        %v339 = vmul.f32 %v333, %v333
        %v340 = vsub.f32 0.0, %v332
        %v341 = vmul.f32 %v340, 1.442695
        %v342 = vpow.pop %v341
        %v343 = vmul.f32 %v339, %v342
        %v344 = vadd.f32 %v338, %v343
        %v345 = vsub.f32 %v344, 1.0
        %v346 = vadd.f32 %v345, 0.0
        %vm347 = vcmask 261120
        %348 = vst.msk [vmem:[%s328] sm:$0xff] %vm347, %v346
        %s349 = sand.u32 %s139, 1
        %s350 = scalar_lea.sflag [#allocation4], %s349
        %s351 = sand.u32 %s139, 1
        %s352 = smul.addr %s351, 8
        %s353 = scalar_lea.vmem [#allocation10], %s352
        // Predicated region
        $region53: #{tpu_custom_call.1} parent=35 // pred_check
          %p354 = pneg %p149
        $region54: #{tpu_custom_call.1} parent=35 // pred_check_branch
          %356 = sbr.rel (%p354) target = $region56
        $region55: #{tpu_custom_call.1} parent=35 // pred_region
          %358 = vsyncadd %s350, 0
          %s359 = smul.addr %s27, 8
          %s360 = scalar_lea.hbm %s4, %s359
          %s362 = sshll.u32 %s353, 4
          %s363 = int_to_ptr.vmem [resolvable:$true] %s362
          %s364 = sshll.u32 %s360, 4
          %s365 = int_to_ptr.hbm [resolvable:$true] %s364
          %367 = dma.vmem_to_hbm [thread:$0]  %s363, 128, %s365, %s350
        $region56: #{tpu_custom_call.1} parent=35 // pred_fallthru
          _
      $region36: #{tpu_custom_call.1} parent=5 // pred_fallthru
        _
      %p368 = scmp.le.s32.totalorder 2, %s22
      // Predicated region
      $region57: #{tpu_custom_call.1} parent=5 // pred_check
        %p369 = pneg %p368
      $region58: #{tpu_custom_call.1} parent=5 // pred_check_branch
        %371 = sbr.rel (%p369) target = $region60
      $region59: #{tpu_custom_call.1} parent=5 // pred_region
        %s372 = ssub.s32 %s22, 2
        // Predicated region
        $region61: #{tpu_custom_call.1} parent=59 // pred_check
          %p373 = pneg %p155
        $region62: #{tpu_custom_call.1} parent=59 // pred_check_branch
          %375 = sbr.rel (%p373) target = $region64
        $region63: #{tpu_custom_call.1} parent=59 // pred_region
          %s376 = sand.u32 %s140, 1
          %s377 = scalar_lea.sflag [#allocation4], %s376
          %s378 = sand.u32 %s140, 1
          %s379 = smul.addr %s378, 8
          %s380 = scalar_lea.vmem [#allocation10], %s379
          %382 = dma.done %s377, 128
        $region64: #{tpu_custom_call.1} parent=59 // pred_fallthru
          _
      $region60: #{tpu_custom_call.1} parent=5 // pred_fallthru
        _
    $region6: #{tpu_custom_call.1} parent=1 // loop_footer
      %s26 = sadd.s32 1, %s22
    $region7: #{tpu_custom_call.1} parent=1 // loop_footer_branch
      %21 = sbr.rel target = $region3
    $region8: #{tpu_custom_call.1} parent=1 // loop_exit
      _
    %383 = vsyncpa [#allocation3], 1
    %s384 = scalar_lea.sflag [#allocation3], 1
    %385 = vsyncpa %s384, 1
    %386 = vsyncpa [#allocation6], 1
    %s387 = scalar_lea.sflag [#allocation6], 1
    %388 = vsyncpa %s387, 1
    %389 = vsyncpa [#allocation9], 1
    %s390 = scalar_lea.sflag [#allocation9], 1
    %391 = vsyncpa %s390, 1
    %392 = vsyncpa [#allocation4], 1
    %s393 = scalar_lea.sflag [#allocation4], 1
    %394 = vsyncpa %s393, 1

</llo_original>
